<compile_context>
chip_gen: v7x
topology: tpu7x:2x2x1
jax: 0.10.0
libtpu: 0.0.40
codegen_flags: <defaults>
</compile_context>

<pallas_src>
import functools
import math

import jax
import jax.numpy as jnp
from jax import lax
from jax.experimental import pallas as pl
from jax.experimental.pallas import tpu as pltpu

_LANES = 128


def _sublane_multiple(dtype) -> int:
    """Minimum sublane multiple for a dtype (8 for 4B, 16 for 2B, 32 for 1B)."""
    itemsize = jnp.dtype(dtype).itemsize
    return 8 * max(1, 4 // itemsize)


def _tpu_config():
    """(per-input block byte budget, tensorcores per chip), by generation.

    2 inputs x 2 pipeline buffers x budget must stay well under the scoped
    VMEM default (16 MiB on v5e, 32 MiB on v6e/v7x)."""
    try:
        kind = jax.devices()[0].device_kind.lower()
    except Exception:
        kind = ""
    if "v7" in kind:
        return 4 * 1024 * 1024, 2     # 16 MiB buffered; 2 TCs share the grid
    if "v6" in kind:
        return 4 * 1024 * 1024, 1
    return 2 * 1024 * 1024, 1         # conservative default (safe on v5e)


def _jaccard_partial_kernel(x_ref, t_ref, out_ref, *, num_chunks, sub_mult,
                            unroll):
    """Reduce one (block_rows, 128) block to (2, sub_mult, 128) partial sums.

    Fused single pass: every (sub_mult, 128) chunk is loaded once, upcast to
    f32 and folded into two accumulators (x*t and x+t); no block-sized
    intermediates ever hit VMEM."""

    def body(c, carry):
        acc_i, acc_t = carry
        r = pl.multiple_of(c * sub_mult, sub_mult)
        x = x_ref[pl.ds(r, sub_mult), :].astype(jnp.float32)
        t = t_ref[pl.ds(r, sub_mult), :].astype(jnp.float32)
        return acc_i + x * t, acc_t + (x + t)

    zero = jnp.zeros((sub_mult, _LANES), jnp.float32)
    acc_i, acc_t = lax.fori_loop(0, num_chunks, body, (zero, zero),
                                 unroll=unroll)
    out_ref[0, 0, :, :] = acc_i
    out_ref[0, 1, :, :] = acc_t


def jaccard_loss(inputs, targets, smooth=1.0):
    """Pallas TPU implementation of JaccardLoss.forward (returns scalar f32)."""
    assert inputs.shape == targets.shape

    smooth = jnp.float32(smooth)
    x = inputs.reshape(-1)   # native dtype; upcast happens in-kernel
    t = targets.reshape(-1)
    n = x.shape[0]

    inter = jnp.float32(0.0)
    total = jnp.float32(0.0)

    sub_mult = max(_sublane_multiple(x.dtype), _sublane_multiple(t.dtype))
    max_itemsize = max(jnp.dtype(x.dtype).itemsize, jnp.dtype(t.dtype).itemsize)
    block_bytes, num_cores = _tpu_config()
    target_rows = block_bytes // (_LANES * max_itemsize)
    target_rows = max(sub_mult, (target_rows // sub_mult) * sub_mult)

    rows = n // _LANES               # number of full 128-lane rows
    covered = 0                      # elements reduced by the Pallas kernel

    if rows >= sub_mult:
        # Balanced full blocks only: no Pallas block padding, no masking.
        num_blocks = max(1, -(-rows // target_rows))          # ceil
        if num_cores >= 2 and num_blocks == 1 and rows >= 2 * sub_mult:
            num_blocks = 2            # give both v7x TensorCores a block
        block_rows = (rows // (num_blocks * sub_mult)) * sub_mult
        kernel_rows = num_blocks * block_rows
        covered = kernel_rows * _LANES

        aligned_n = rows * _LANES
        if aligned_n == n:
            x2 = x.reshape(rows, _LANES)      # free: contiguous reshape
            t2 = t.reshape(rows, _LANES)
        else:
            # Non-128-aligned element count: feed the aligned prefix only.
            # (XLA may materialize this prefix copy, but it replaces the old
            # full-array jnp.pad round trip and keeps the kernel mask-free.)
            x2 = x[:aligned_n].reshape(rows, _LANES)
            t2 = t[:aligned_n].reshape(rows, _LANES)

        num_chunks = block_rows // sub_mult
        unroll = max(1, math.gcd(num_chunks, 8))
        kernel = functools.partial(_jaccard_partial_kernel,
                                   num_chunks=num_chunks,
                                   sub_mult=sub_mult,
                                   unroll=unroll)

        partials = pl.pallas_call(
            kernel,
            out_shape=jax.ShapeDtypeStruct(
                (num_blocks, 2, sub_mult, _LANES), jnp.float32),
            grid_spec=pltpu.PrefetchScalarGridSpec(
                num_scalar_prefetch=0,
                grid=(num_blocks,),
                in_specs=[
                    pl.BlockSpec((block_rows, _LANES), lambda i: (i, 0)),
                    pl.BlockSpec((block_rows, _LANES), lambda i: (i, 0)),
                ],
                out_specs=pl.BlockSpec((1, 2, sub_mult, _LANES),
                                       lambda i: (i, 0, 0, 0)),
            ),
            compiler_params=pltpu.CompilerParams(
                # Each block is an independent partial reduction.
                dimension_semantics=("parallel",),
            ),
        )(x2, t2)

        inter = inter + jnp.sum(partials[:, 0])
        total = total + jnp.sum(partials[:, 1])

    # Ragged tail: remainder rows that did not fill a whole block plus the
    # <128-element lane tail.  Tiny, handled with plain XLA ops.
    if covered < n:
        x_tail = x[covered:].astype(jnp.float32)
        t_tail = t[covered:].astype(jnp.float32)
        inter = inter + jnp.sum(x_tail * t_tail)
        total = total + jnp.sum(x_tail + t_tail)

    union = total - inter
    jac = (inter + smooth) / (union + smooth)
    return -jnp.log(jac)


def jaccard_loss_ref(inputs, targets, smooth=1.0):
    inputs = inputs.astype(jnp.float32)
    targets = targets.astype(jnp.float32)
    intersection = jnp.sum(inputs * targets)
    total = jnp.sum(inputs + targets)
    union = total - intersection
    jac = (intersection + smooth) / (union + smooth)
    return -jnp.log(jac)


if __name__ == "__main__":
    key = jax.random.PRNGKey(0)
    k1, k2 = jax.random.split(key)

    # NCHW, small: batch=2, channels=4, spatial=16x16 (segmentation-like).
    shape = (2, 4, 16, 16)
    inputs = jax.nn.sigmoid(jax.random.normal(k1, shape, dtype=jnp.float32))
    targets = (jax.random.uniform(k2, shape) > 0.5).astype(jnp.float32)

    loss = jaccard_loss(inputs, targets, smooth=1.0)
    loss = jax.block_until_ready(loss)

    ref = jaccard_loss_ref(inputs, targets, smooth=1.0)
    assert jnp.allclose(loss, ref, rtol=1e-5, atol=1e-5), (loss, ref)

    print("KERNEL_OK")
</pallas_src>

<mosaic_0001>
module attributes {stable_mosaic.version = 11 : i64} {
  func.func @_jaccard_partial_kernel(%arg0: i32, %arg1: memref<16x128xf32, #tpu.memory_space<vmem>>, %arg2: memref<16x128xf32, #tpu.memory_space<vmem>>, %arg3: memref<1x2x8x128xf32, #tpu.memory_space<vmem>>) attributes {dimension_semantics = [#tpu.dimension_semantics<parallel>], iteration_bounds = array<i64: 1>, scalar_prefetch = 0 : i64, scratch_operands = 0 : i64, tpu.core_type = #tpu.core_type<tc>, window_params = [{transform_indices = @transform_0, window_bounds = array<i64: 16, 128>}, {transform_indices = @transform_1, window_bounds = array<i64: 16, 128>}, {transform_indices = @transform_2, window_bounds = array<i64: 1, 2, 8, 128>}]} {
    %cst = arith.constant 0.000000e+00 : f32
    %0 = vector.broadcast %cst : f32 to vector<8x128xf32>
    %c0_i32 = arith.constant 0 : i32
    %c8_i32 = arith.constant 8 : i32
    %1 = arith.muli %c0_i32, %c8_i32 : i32
    %2 = tpu.assume_multiple %1, 8 : i32
    %3 = arith.index_cast %2 : i32 to index
    %c0 = arith.constant 0 : index
    %4 = vector.load %arg1[%3, %c0] : memref<16x128xf32, #tpu.memory_space<vmem>>, vector<8x128xf32>
    %5 = arith.index_cast %2 : i32 to index
    %c0_0 = arith.constant 0 : index
    %6 = vector.load %arg2[%5, %c0_0] : memref<16x128xf32, #tpu.memory_space<vmem>>, vector<8x128xf32>
    %7 = arith.mulf %4, %6 : vector<8x128xf32>
    %8 = arith.addf %0, %7 : vector<8x128xf32>
    %9 = arith.addf %4, %6 : vector<8x128xf32>
    %10 = arith.addf %0, %9 : vector<8x128xf32>
    %c1_i32 = arith.constant 1 : i32
    %c8_i32_1 = arith.constant 8 : i32
    %11 = arith.muli %c1_i32, %c8_i32_1 : i32
    %12 = tpu.assume_multiple %11, 8 : i32
    %13 = arith.index_cast %12 : i32 to index
    %c0_2 = arith.constant 0 : index
    %14 = vector.load %arg1[%13, %c0_2] : memref<16x128xf32, #tpu.memory_space<vmem>>, vector<8x128xf32>
    %15 = arith.index_cast %12 : i32 to index
    %c0_3 = arith.constant 0 : index
    %16 = vector.load %arg2[%15, %c0_3] : memref<16x128xf32, #tpu.memory_space<vmem>>, vector<8x128xf32>
    %17 = arith.mulf %14, %16 : vector<8x128xf32>
    %18 = arith.addf %8, %17 : vector<8x128xf32>
    %19 = arith.addf %14, %16 : vector<8x128xf32>
    %20 = arith.addf %10, %19 : vector<8x128xf32>
    %c2_i32 = arith.constant 2 : i32
    %c0_4 = arith.constant 0 : index
    %c0_5 = arith.constant 0 : index
    %c0_6 = arith.constant 0 : index
    %c0_7 = arith.constant 0 : index
    %21 = vector.load %arg3[%c0_4, %c0_5, %c0_6, %c0_7] : memref<1x2x8x128xf32, #tpu.memory_space<vmem>>, vector<1x1x8x128xf32>
    %22 = vector.shape_cast %21 : vector<1x1x8x128xf32> to vector<8x128xf32>
    %23 = vector.shape_cast %18 : vector<8x128xf32> to vector<1x1x8x128xf32>
    tpu.vector_store %arg3[%c0_4, %c0_5, %c0_6, %c0_7], %23 {strides = array<i32>} : memref<1x2x8x128xf32, #tpu.memory_space<vmem>>, vector<1x1x8x128xf32>,
    %c0_8 = arith.constant 0 : index
    %c1 = arith.constant 1 : index
    %c0_9 = arith.constant 0 : index
    %c0_10 = arith.constant 0 : index
    %24 = vector.load %arg3[%c0_8, %c1, %c0_9, %c0_10] : memref<1x2x8x128xf32, #tpu.memory_space<vmem>>, vector<1x1x8x128xf32>
    %25 = vector.shape_cast %24 : vector<1x1x8x128xf32> to vector<8x128xf32>
    %26 = vector.shape_cast %20 : vector<8x128xf32> to vector<1x1x8x128xf32>
    tpu.vector_store %arg3[%c0_8, %c1, %c0_9, %c0_10], %26 {strides = array<i32>} : memref<1x2x8x128xf32, #tpu.memory_space<vmem>>, vector<1x1x8x128xf32>,
    return
  }
  func.func @transform_0(%arg0: i32) -> (i32, i32) {
    %c0_i32 = arith.constant 0 : i32
    %c0_i32_0 = arith.constant 0 : i32
    return %arg0, %c0_i32 : i32, i32
  }
  func.func @transform_1(%arg0: i32) -> (i32, i32) {
    %c0_i32 = arith.constant 0 : i32
    %c0_i32_0 = arith.constant 0 : i32
    return %arg0, %c0_i32 : i32, i32
  }
  func.func @transform_2(%arg0: i32) -> (i32, i32, i32, i32) {
    %c0_i32 = arith.constant 0 : i32
    %c0_i32_0 = arith.constant 0 : i32
    %c0_i32_1 = arith.constant 0 : i32
    %c0_i32_2 = arith.constant 0 : i32
    return %arg0, %c0_i32, %c0_i32_0, %c0_i32_1 : i32, i32, i32, i32
  }
}

</mosaic_0001>

<llo_original>
// kernel: tpu_custom_call.1
$region0: #{tpu_custom_call.1}
  #allocation0 [shape = 'u32[]', space=smem, size = 0x4, offset = 0x4, fixed_abs, tag = 'smem constant byte address 0x4 - core index']
  #allocation1 [shape = 'u32[144,128]{1,0:T(1,128)}', space=vmem, size = 0x12000, scoped, tag = 'internal scratch']
  %s0 = inlined_call_operand.hbm [shape: f32[16,128], index: 0, kind: input, shape index: {}]
  %s1 = inlined_call_operand.hbm [shape: f32[16,128], index: 1, kind: input, shape index: {}]
  %s2 = inlined_call_operand.hbm [shape: f32[1,2,8,128], index: 2, kind: output, shape index: {}]
  %s3 = sld [smem:[#allocation0]]
  $region26: #{tpu_custom_call.1} parent=0
    _
  %s5 = ssub.s32 1, %s3
  %s6 = scalar_select 0, %s5, %s3
  $region1: #{tpu_custom_call.1} parent=0
    #allocation2 [shape = 'u8[8192]{0}', space=vmem, size = 0x2000, scoped, tag = 'input window, operand 0, single buffered']
    #allocation3 [shape = 's32[1]{0}', space=sflag, size = 0x4, scoped, tag = 'scoped memory for tpu_custom_call.1']
    #allocation4 [shape = 's32[1]{0}', space=sflag, size = 0x4, scoped, tag = 'scoped memory for tpu_custom_call.1']
    #allocation5 [shape = 'u8[8192]{0}', space=vmem, size = 0x2000, scoped, tag = 'input window, operand 1, single buffered']
    #allocation6 [shape = 's32[1]{0}', space=sflag, size = 0x4, scoped, tag = 'scoped memory for tpu_custom_call.1']
    #allocation7 [shape = 'u8[8192]{0}', space=vmem, size = 0x2000, scoped, tag = 'output window, operand 0, single buffered']
    %7 = vsyncpa [#allocation3], 0
    %8 = vsyncpa [#allocation6], 0
    %9 = vsyncpa [#allocation4], 0
    // Predicated region
    $region2: #{tpu_custom_call.1} parent=1 // pred_check
      _
    $region3: #{tpu_custom_call.1} parent=1 // pred_check_branch
      %11 = sbr.rel (0) target = $region5
    $region4: #{tpu_custom_call.1} parent=1 // pred_region
      %s13 = ssub.s32 256, 256
      %14 = vsyncadd [#allocation3], %s13
      %s15 = sshll.u32 [#allocation2], 4
      %s16 = int_to_ptr.vmem [resolvable:$true] %s15
      %21 = dma.hbm_to_vmem [thread:$0]  %s0, 256, %s16, [#allocation3], 128, 128, 8
    $region5: #{tpu_custom_call.1} parent=1 // pred_fallthru
      _
    // Predicated region
    $region6: #{tpu_custom_call.1} parent=1 // pred_check
      _
    $region7: #{tpu_custom_call.1} parent=1 // pred_check_branch
      %23 = sbr.rel (0) target = $region9
    $region8: #{tpu_custom_call.1} parent=1 // pred_region
      %s25 = ssub.s32 256, 256
      %26 = vsyncadd [#allocation6], %s25
      %s27 = sshll.u32 [#allocation5], 4
      %s28 = int_to_ptr.vmem [resolvable:$true] %s27
      %33 = dma.hbm_to_vmem [thread:$0]  %s1, 256, %s28, [#allocation6], 128, 128, 8
    $region9: #{tpu_custom_call.1} parent=1 // pred_fallthru
      _
    // Predicated region
    $region10: #{tpu_custom_call.1} parent=1 // pred_check
      _
    $region11: #{tpu_custom_call.1} parent=1 // pred_check_branch
      %35 = sbr.rel (0) target = $region13
    $region12: #{tpu_custom_call.1} parent=1 // pred_region
      %36 = dma.done [#allocation3], 256
    $region13: #{tpu_custom_call.1} parent=1 // pred_fallthru
      _
    // Predicated region
    $region14: #{tpu_custom_call.1} parent=1 // pred_check
      _
    $region15: #{tpu_custom_call.1} parent=1 // pred_check_branch
      %38 = sbr.rel (0) target = $region17
    $region16: #{tpu_custom_call.1} parent=1 // pred_region
      %39 = dma.done [#allocation6], 256
    $region17: #{tpu_custom_call.1} parent=1 // pred_fallthru
      _
    %v40 = vld [vmem:[#allocation2] sm:$0xff]
    %v41 = vld [vmem:[#allocation5] sm:$0xff]
    %v42 = vmul.f32 %v40, %v41
    %v43 = vadd.f32 %v42, 0.0
    %v44 = vadd.f32 %v40, %v41
    %v45 = vadd.f32 %v44, 0.0
    %s46 = scalar_lea.vmem [#allocation2], 8
    %v47 = vld [vmem:[%s46] sm:$0xff]
    %s48 = scalar_lea.vmem [#allocation5], 8
    %v49 = vld [vmem:[%s48] sm:$0xff]
    %v50 = vmul.f32 %v47, %v49
    %v51 = vadd.f32 %v43, %v50
    %v52 = vadd.f32 %v47, %v49
    %v53 = vadd.f32 %v45, %v52
    %54 = vst [vmem:[#allocation7] sm:$0xff] %v51
    %s55 = scalar_lea.vmem [#allocation7], 8
    %56 = vst [vmem:[%s55] sm:$0xff] %v53
    // Predicated region
    $region18: #{tpu_custom_call.1} parent=1 // pred_check
      _
    $region19: #{tpu_custom_call.1} parent=1 // pred_check_branch
      %58 = sbr.rel (0) target = $region21
    $region20: #{tpu_custom_call.1} parent=1 // pred_region
      %s60 = ssub.s32 256, 256
      %61 = vsyncadd [#allocation4], %s60
      %s62 = sshll.u32 [#allocation7], 4
      %s63 = int_to_ptr.vmem [resolvable:$true] %s62
      %68 = dma.vmem_to_hbm [thread:$0]  %s63, 256, %s2, [#allocation4], 128, 128, 8
    $region21: #{tpu_custom_call.1} parent=1 // pred_fallthru
      _
    // Predicated region
    $region22: #{tpu_custom_call.1} parent=1 // pred_check
      _
    $region23: #{tpu_custom_call.1} parent=1 // pred_check_branch
      %70 = sbr.rel (0) target = $region25
    $region24: #{tpu_custom_call.1} parent=1 // pred_region
      %71 = dma.done [#allocation4], 256
    $region25: #{tpu_custom_call.1} parent=1 // pred_fallthru
      _
    %72 = vsyncpa [#allocation3], 1
    %73 = vsyncpa [#allocation6], 1
    %74 = vsyncpa [#allocation4], 1

</llo_original>
